<compile_context>
chip_gen: v7x
topology: tpu7x:2x2x1
jax: 0.10.0
libtpu: 0.0.40
codegen_flags: <defaults>
</compile_context>

<pallas_src>
import functools

import jax
import jax.numpy as jnp
from jax.experimental import pallas as pl
from jax.experimental.pallas import tpu as pltpu


def _round_up(x: int, m: int) -> int:
    return ((x + m - 1) // m) * m


def _round_down(x: int, m: int) -> int:
    return (x // m) * m


def _num_tensorcores() -> int:
    # Best-effort detection of a 2-TC chip (v7x); default to 1 TC if unsure.
    try:
        kind = jax.devices()[0].device_kind.lower()
    except Exception:
        return 1
    return 2 if ("v7" in kind or "7x" in kind or "tpu7" in kind) else 1


def _avg_pool_kernel(x_ref, o_ref, acc_ref, *, group: int, rows_last: int, inv_n: float):
    # grid = (F_tiles, N_tiles); axis 1 (N) is the reduction axis.
    k = pl.program_id(1)
    last = pl.num_programs(1) - 1

    @pl.when(k == 0)
    def _init():
        acc_ref[...] = jnp.zeros_like(acc_ref)

    tn, tf = x_ref.shape

    def partial_sum(x):
        # Whole-vreg sublane groups -> pure VPU vreg adds with f32 accumulation.
        return jnp.sum(x.reshape(tn // group, group, tf), axis=0, dtype=jnp.float32)

    if rows_last == tn:
        # N divides the tile: every block is full, no masking anywhere.
        acc_ref[...] += partial_sum(x_ref[...])
    else:
        @pl.when(k != last)
        def _full_block():
            acc_ref[...] += partial_sum(x_ref[...])

        @pl.when(k == last)
        def _ragged_block():
            # Last N block is ragged: rows >= rows_last hold undefined data;
            # zero them before accumulating (zeros do not affect the sum).
            x = x_ref[...]
            row = jax.lax.broadcasted_iota(jnp.int32, (tn, tf), 0)
            acc_ref[...] += partial_sum(jnp.where(row < rows_last, x, jnp.zeros_like(x)))

    @pl.when(k == last)
    def _finalize():
        # Single cross-sublane (XLU) reduce per F tile, once at the end.
        col_sum = jnp.sum(acc_ref[...], axis=0, keepdims=True)  # (1, TF) f32
        o_ref[...] = (col_sum * inv_n).astype(o_ref.dtype)


def avg_pooling(x: jax.Array) -> jax.Array:
    """Pallas equivalent of AvgPooling.forward: mean over dim 0, then transpose.

    x: (N, F)  ->  returns (F, 1)
    """
    assert x.ndim == 2, "AvgPooling expects a 2-D input (N, F)"
    n, f = x.shape
    itemsize = jnp.dtype(x.dtype).itemsize

    # Tiny-input bypass: below ~512 KiB the fixed pallas_call + per-step
    # overhead dominates while XLA's fused column-reduce is at the roofline.
    if n * f * itemsize <= 512 * 1024:
        return jnp.mean(x, axis=0, keepdims=True).T

    # --- tile selection -----------------------------------------------------
    group = {4: 8, 2: 16, 1: 32}.get(itemsize, 8)  # one vreg's sublane extent
    f128 = _round_up(f, 128)
    num_tc = _num_tensorcores()

    # Per-input-buffer VMEM budget (double-buffered by the pipeline):
    #   v5e/v6e-safe default 4 MiB; 8 MiB on 2-TC chips (v7x, 32 MiB scoped).
    budget = (8 if num_tc >= 2 else 4) * 1024 * 1024

    # Ensure >= 2 F tiles on multi-TC chips so both cores contribute bandwidth.
    max_tf = f128
    if num_tc >= 2 and f128 >= 256:
        max_tf = _round_up(-(-f128 // 2), 128)

    # Prefer wide (ideally full-row) lane tiles for contiguous DMA runs.
    tf = max(128, min(max_tf, 2048))

    tn_cap = _round_up(n, group)
    tn_budget = max(group, _round_down(budget // (tf * itemsize), group))
    tn = min(tn_cap, tn_budget)
    if tn < tn_budget:
        # Rows exhausted before the budget: spend the leftover on wider F tiles.
        tf = max(128, min(max_tf, _round_down(budget // (tn * itemsize), 128)))

    num_f_tiles = pl.cdiv(f, tf)
    num_n_tiles = pl.cdiv(n, tn)
    rows_last = n - (num_n_tiles - 1) * tn  # rows valid in the last N block

    grid = (num_f_tiles, num_n_tiles)  # reduction (N) axis last

    kernel = functools.partial(
        _avg_pool_kernel, group=group, rows_last=rows_last, inv_n=1.0 / n
    )

    mean_1f = pl.pallas_call(
        kernel,
        out_shape=jax.ShapeDtypeStruct((1, f), x.dtype),
        grid_spec=pltpu.PrefetchScalarGridSpec(
            num_scalar_prefetch=0,
            grid=grid,
            in_specs=[pl.BlockSpec((tn, tf), lambda j, k: (k, j))],
            out_specs=pl.BlockSpec((1, tf), lambda j, k: (0, j)),
            scratch_shapes=[pltpu.VMEM((group, tf), jnp.float32)],
        ),
        compiler_params=pltpu.CompilerParams(
            # F tiles independent -> shard across TCs on v7x; harmless on 1-TC chips.
            dimension_semantics=("parallel", "arbitrary"),
        ),
        cost_estimate=pl.CostEstimate(
            flops=n * f,
            transcendentals=0,
            bytes_accessed=n * f * itemsize + f * itemsize,
        ),
    )(x)

    # Glue: (1, F) -> (F, 1) transpose (pure layout).
    return mean_1f.T


if __name__ == "__main__":
    key = jax.random.PRNGKey(0)
    k1, k2, k3 = jax.random.split(key, 3)

    # Shape that exercises the tiled Pallas reduction with a ragged N tail
    # (1000 not a multiple of the row tile) and a ragged F block (200 < 256).
    N, F = 1000, 200
    x = jax.random.normal(k1, (N, F), dtype=jnp.float32)
    out = jax.block_until_ready(avg_pooling(x))
    ref = jnp.mean(x, axis=0, keepdims=True).T
    assert out.shape == (F, 1), out.shape
    assert jnp.allclose(out, ref, atol=1e-5, rtol=1e-5), float(
        jnp.max(jnp.abs(out - ref))
    )

    # bf16 path: exercises the dtype-aware sublane grouping (group = 16).
    xb = jax.random.normal(k2, (2048, 256), dtype=jnp.bfloat16)
    outb = jax.block_until_ready(avg_pooling(xb))
    refb = jnp.mean(xb, axis=0, keepdims=True).T
    assert outb.shape == (256, 1), outb.shape
    assert jnp.allclose(
        outb.astype(jnp.float32), refb.astype(jnp.float32), atol=2e-3, rtol=2e-2
    )

    # Tiny shape consistent with the module usage: bypass path.
    xs = jax.random.normal(k3, (8, 32), dtype=jnp.float32)
    outs = jax.block_until_ready(avg_pooling(xs))
    refs = jnp.mean(xs, axis=0, keepdims=True).T
    assert outs.shape == (32, 1), outs.shape
    assert jnp.allclose(outs, refs, atol=1e-6, rtol=1e-6)

    print("KERNEL_OK")
</pallas_src>

<mosaic_0001>
module attributes {stable_mosaic.version = 11 : i64} {
  func.func @_avg_pool_kernel(%arg0: i32, %arg1: i32, %arg2: memref<1000x256xf32, #tpu.memory_space<vmem>>, %arg3: memref<1x256xf32, #tpu.memory_space<vmem>>, %arg4: memref<8x256xf32, #tpu.memory_space<vmem>>) attributes {dimension_semantics = [#tpu.dimension_semantics<parallel>, #tpu.dimension_semantics<arbitrary>], iteration_bounds = array<i64: 1, 1>, scalar_prefetch = 0 : i64, scratch_operands = 1 : i64, tpu.core_type = #tpu.core_type<tc>, window_params = [{transform_indices = @transform_0, window_bounds = array<i64: 1000, 256>}, {transform_indices = @transform_1, window_bounds = array<i64: 1, 256>}]} {
    %c0_i32 = arith.constant 0 : i32
    %0 = arith.cmpi eq, %arg1, %c0_i32 : i32
    %1 = arith.extui %0 : i1 to i32
    %c0_i32_0 = arith.constant 0 : i32
    %2 = arith.cmpi ne, %1, %c0_i32_0 : i32
    scf.if %2 {
      %cst_8 = arith.constant 0.000000e+00 : f32
      %12 = vector.broadcast %cst_8 : f32 to vector<8x256xf32>
      %c0_9 = arith.constant 0 : index
      %c0_10 = arith.constant 0 : index
      %13 = vector.load %arg4[%c0_9, %c0_10] : memref<8x256xf32, #tpu.memory_space<vmem>>, vector<8x256xf32>
      tpu.vector_store %arg4[%c0_9, %c0_10], %12 {strides = array<i32>} : memref<8x256xf32, #tpu.memory_space<vmem>>, vector<8x256xf32>,
    } else {
    }
    %c0 = arith.constant 0 : index
    %c0_1 = arith.constant 0 : index
    %3 = vector.load %arg4[%c0, %c0_1] : memref<8x256xf32, #tpu.memory_space<vmem>>, vector<8x256xf32>
    %c0_2 = arith.constant 0 : index
    %c0_3 = arith.constant 0 : index
    %4 = vector.load %arg2[%c0_2, %c0_3] : memref<1000x256xf32, #tpu.memory_space<vmem>>, vector<1000x256xf32>
    %5 = vector.shape_cast %4 : vector<1000x256xf32> to vector<125x8x256xf32>
    %cst = arith.constant dense<0.000000e+00> : vector<8x256xf32>
    %6 = vector.multi_reduction <add>, %5, %cst [0] : vector<125x8x256xf32> to vector<8x256xf32>
    %7 = arith.addf %3, %6 : vector<8x256xf32>
    %c0_4 = arith.constant 0 : index
    %c0_5 = arith.constant 0 : index
    %8 = vector.load %arg4[%c0_4, %c0_5] : memref<8x256xf32, #tpu.memory_space<vmem>>, vector<8x256xf32>
    tpu.vector_store %arg4[%c0_4, %c0_5], %7 {strides = array<i32>} : memref<8x256xf32, #tpu.memory_space<vmem>>, vector<8x256xf32>,
    %c0_i32_6 = arith.constant 0 : i32
    %9 = arith.cmpi eq, %arg1, %c0_i32_6 : i32
    %10 = arith.extui %9 : i1 to i32
    %c0_i32_7 = arith.constant 0 : i32
    %11 = arith.cmpi ne, %10, %c0_i32_7 : i32
    scf.if %11 {
      %c0_8 = arith.constant 0 : index
      %c0_9 = arith.constant 0 : index
      %12 = vector.load %arg4[%c0_8, %c0_9] : memref<8x256xf32, #tpu.memory_space<vmem>>, vector<8x256xf32>
      %cst_10 = arith.constant dense<0.000000e+00> : vector<256xf32>
      %13 = vector.multi_reduction <add>, %12, %cst_10 [0] : vector<8x256xf32> to vector<256xf32>
      %14 = vector.shape_cast %13 : vector<256xf32> to vector<1x256xf32>
      %cst_11 = arith.constant 1.000000e-03 : f32
      %15 = vector.broadcast %cst_11 : f32 to vector<1x256xf32>
      %16 = arith.mulf %14, %15 : vector<1x256xf32>
      %c0_12 = arith.constant 0 : index
      %c0_13 = arith.constant 0 : index
      %17 = vector.load %arg3[%c0_12, %c0_13] : memref<1x256xf32, #tpu.memory_space<vmem>>, vector<1x256xf32>
      tpu.vector_store %arg3[%c0_12, %c0_13], %16 {strides = array<i32>} : memref<1x256xf32, #tpu.memory_space<vmem>>, vector<1x256xf32>,
    } else {
    }
    return
  }
  func.func @transform_0(%arg0: i32, %arg1: i32) -> (i32, i32) {
    %c0_i32 = arith.constant 0 : i32
    return %arg1, %arg0 : i32, i32
  }
  func.func @transform_1(%arg0: i32, %arg1: i32) -> (i32, i32) {
    %c0_i32 = arith.constant 0 : i32
    %c0_i32_0 = arith.constant 0 : i32
    return %c0_i32, %arg0 : i32, i32
  }
}

</mosaic_0001>

<llo_original>
// kernel: tpu_custom_call.1
$region0: #{tpu_custom_call.1}
  #allocation0 [shape = 'u32[]', space=smem, size = 0x4, offset = 0x4, fixed_abs, tag = 'smem constant byte address 0x4 - core index']
  #allocation1 [shape = 'u32[144,128]{1,0:T(1,128)}', space=vmem, size = 0x12000, scoped, tag = 'internal scratch']
  #allocation2 [shape = 'f32[8,256]{1,0:T(8,128)}', space=vmem, size = 0x2000, scoped, tag = 'scratch operand']
  %s0 = inlined_call_operand.vmem [shape: f32[1000,200], index: 0, kind: input, shape index: {}]
  %s1 = inlined_call_operand.hbm [shape: f32[1,200], index: 1, kind: output, shape index: {}]
  %s2 = sld [smem:[#allocation0]]
  $region22: #{tpu_custom_call.1} parent=0
    _
  %s4 = ssub.s32 1, %s2
  %s5 = scalar_select 0, %s4, %s2
  $region1: #{tpu_custom_call.1} parent=0
    #allocation3 [shape = 'u8[1024]{0}', space=vmem, size = 0x400, scoped, tag = 'output window, operand 0, single buffered']
    #allocation4 [shape = 's32[1]{0}', space=sflag, size = 0x4, scoped, tag = 'scoped memory for tpu_custom_call.1']
    %6 = vsyncpa [#allocation4], 0
    // Predicated region
    $region2: #{tpu_custom_call.1} parent=1 // pred_check
      _
    $region3: #{tpu_custom_call.1} parent=1 // pred_check_branch
      %8 = sbr.rel (0) target = $region5
    $region4: #{tpu_custom_call.1} parent=1 // pred_region
      _
    $region5: #{tpu_custom_call.1} parent=1 // pred_fallthru
      _
    %p9 = scmp.eq.s32.totalorder 0, 0
    // Predicated region
    $region6: #{tpu_custom_call.1} parent=1 // pred_check
      %p10 = pneg %p9
    $region7: #{tpu_custom_call.1} parent=1 // pred_check_branch
      %12 = sbr.rel (%p10) target = $region9
    $region8: #{tpu_custom_call.1} parent=1 // pred_region
      %13 = vst [vmem:[#allocation2] sm:$0xff] 0.0
      %14 = vst [vmem:[#allocation2 + $0x8] sm:$0xff] 0.0
    $region9: #{tpu_custom_call.1} parent=1 // pred_fallthru
      _
    %v15 = vld [vmem:[#allocation2] sm:$0xff]
    %v16 = vld [vmem:[#allocation2 + $0x8] sm:$0xff]
    %v17 = vld [vmem:[%s0] sm:$0xff]
    %v18 = vld [vmem:[%s0 + $0x8] sm:$0xff]
    %v19 = vld [vmem:[%s0 + $0x10] sm:$0xff]
    %v20 = vld [vmem:[%s0 + $0x18] sm:$0xff]
    %v21 = vld [vmem:[%s0 + $0x20] sm:$0xff]
    %v22 = vld [vmem:[%s0 + $0x28] sm:$0xff]
    %v23 = vld [vmem:[%s0 + $0x30] sm:$0xff]
    %v24 = vld [vmem:[%s0 + $0x38] sm:$0xff]
    %v25 = vld [vmem:[%s0 + $0x40] sm:$0xff]
    %v26 = vld [vmem:[%s0 + $0x48] sm:$0xff]
    %v27 = vld [vmem:[%s0 + $0x50] sm:$0xff]
    %v28 = vld [vmem:[%s0 + $0x58] sm:$0xff]
    %v29 = vld [vmem:[%s0 + $0x60] sm:$0xff]
    %v30 = vld [vmem:[%s0 + $0x68] sm:$0xff]
    %v31 = vld [vmem:[%s0 + $0x70] sm:$0xff]
    %v32 = vld [vmem:[%s0 + $0x78] sm:$0xff]
    %v33 = vld [vmem:[%s0 + $0x80] sm:$0xff]
    %v34 = vld [vmem:[%s0 + $0x88] sm:$0xff]
    %v35 = vld [vmem:[%s0 + $0x90] sm:$0xff]
    %v36 = vld [vmem:[%s0 + $0x98] sm:$0xff]
    %v37 = vld [vmem:[%s0 + $0xa0] sm:$0xff]
    %v38 = vld [vmem:[%s0 + $0xa8] sm:$0xff]
    %v39 = vld [vmem:[%s0 + $0xb0] sm:$0xff]
    %v40 = vld [vmem:[%s0 + $0xb8] sm:$0xff]
    %v41 = vld [vmem:[%s0 + $0xc0] sm:$0xff]
    %v42 = vld [vmem:[%s0 + $0xc8] sm:$0xff]
    %v43 = vld [vmem:[%s0 + $0xd0] sm:$0xff]
    %v44 = vld [vmem:[%s0 + $0xd8] sm:$0xff]
    %v45 = vld [vmem:[%s0 + $0xe0] sm:$0xff]
    %v46 = vld [vmem:[%s0 + $0xe8] sm:$0xff]
    %v47 = vld [vmem:[%s0 + $0xf0] sm:$0xff]
    %v48 = vld [vmem:[%s0 + $0xf8] sm:$0xff]
    %v49 = vld [vmem:[%s0 + $0x100] sm:$0xff]
    %v50 = vld [vmem:[%s0 + $0x108] sm:$0xff]
    %v51 = vld [vmem:[%s0 + $0x110] sm:$0xff]
    %v52 = vld [vmem:[%s0 + $0x118] sm:$0xff]
    %v53 = vld [vmem:[%s0 + $0x120] sm:$0xff]
    %v54 = vld [vmem:[%s0 + $0x128] sm:$0xff]
    %v55 = vld [vmem:[%s0 + $0x130] sm:$0xff]
    %v56 = vld [vmem:[%s0 + $0x138] sm:$0xff]
    %v57 = vld [vmem:[%s0 + $0x140] sm:$0xff]
    %v58 = vld [vmem:[%s0 + $0x148] sm:$0xff]
    %v59 = vld [vmem:[%s0 + $0x150] sm:$0xff]
    %v60 = vld [vmem:[%s0 + $0x158] sm:$0xff]
    %v61 = vld [vmem:[%s0 + $0x160] sm:$0xff]
    %v62 = vld [vmem:[%s0 + $0x168] sm:$0xff]
    %v63 = vld [vmem:[%s0 + $0x170] sm:$0xff]
    %v64 = vld [vmem:[%s0 + $0x178] sm:$0xff]
    %v65 = vld [vmem:[%s0 + $0x180] sm:$0xff]
    %v66 = vld [vmem:[%s0 + $0x188] sm:$0xff]
    %v67 = vld [vmem:[%s0 + $0x190] sm:$0xff]
    %v68 = vld [vmem:[%s0 + $0x198] sm:$0xff]
    %v69 = vld [vmem:[%s0 + $0x1a0] sm:$0xff]
    %v70 = vld [vmem:[%s0 + $0x1a8] sm:$0xff]
    %v71 = vld [vmem:[%s0 + $0x1b0] sm:$0xff]
    %v72 = vld [vmem:[%s0 + $0x1b8] sm:$0xff]
    %v73 = vld [vmem:[%s0 + $0x1c0] sm:$0xff]
    %v74 = vld [vmem:[%s0 + $0x1c8] sm:$0xff]
    %v75 = vld [vmem:[%s0 + $0x1d0] sm:$0xff]
    %v76 = vld [vmem:[%s0 + $0x1d8] sm:$0xff]
    %v77 = vld [vmem:[%s0 + $0x1e0] sm:$0xff]
    %v78 = vld [vmem:[%s0 + $0x1e8] sm:$0xff]
    %v79 = vld [vmem:[%s0 + $0x1f0] sm:$0xff]
    %v80 = vld [vmem:[%s0 + $0x1f8] sm:$0xff]
    %v81 = vld [vmem:[%s0 + $0x200] sm:$0xff]
    %v82 = vld [vmem:[%s0 + $0x208] sm:$0xff]
    %v83 = vld [vmem:[%s0 + $0x210] sm:$0xff]
    %v84 = vld [vmem:[%s0 + $0x218] sm:$0xff]
    %v85 = vld [vmem:[%s0 + $0x220] sm:$0xff]
    %v86 = vld [vmem:[%s0 + $0x228] sm:$0xff]
    %v87 = vld [vmem:[%s0 + $0x230] sm:$0xff]
    %v88 = vld [vmem:[%s0 + $0x238] sm:$0xff]
    %v89 = vld [vmem:[%s0 + $0x240] sm:$0xff]
    %v90 = vld [vmem:[%s0 + $0x248] sm:$0xff]
    %v91 = vld [vmem:[%s0 + $0x250] sm:$0xff]
    %v92 = vld [vmem:[%s0 + $0x258] sm:$0xff]
    %v93 = vld [vmem:[%s0 + $0x260] sm:$0xff]
    %v94 = vld [vmem:[%s0 + $0x268] sm:$0xff]
    %v95 = vld [vmem:[%s0 + $0x270] sm:$0xff]
    %v96 = vld [vmem:[%s0 + $0x278] sm:$0xff]
    %v97 = vld [vmem:[%s0 + $0x280] sm:$0xff]
    %v98 = vld [vmem:[%s0 + $0x288] sm:$0xff]
    %v99 = vld [vmem:[%s0 + $0x290] sm:$0xff]
    %v100 = vld [vmem:[%s0 + $0x298] sm:$0xff]
    %v101 = vld [vmem:[%s0 + $0x2a0] sm:$0xff]
    %v102 = vld [vmem:[%s0 + $0x2a8] sm:$0xff]
    %v103 = vld [vmem:[%s0 + $0x2b0] sm:$0xff]
    %v104 = vld [vmem:[%s0 + $0x2b8] sm:$0xff]
    %v105 = vld [vmem:[%s0 + $0x2c0] sm:$0xff]
    %v106 = vld [vmem:[%s0 + $0x2c8] sm:$0xff]
    %v107 = vld [vmem:[%s0 + $0x2d0] sm:$0xff]
    %v108 = vld [vmem:[%s0 + $0x2d8] sm:$0xff]
    %v109 = vld [vmem:[%s0 + $0x2e0] sm:$0xff]
    %v110 = vld [vmem:[%s0 + $0x2e8] sm:$0xff]
    %v111 = vld [vmem:[%s0 + $0x2f0] sm:$0xff]
    %v112 = vld [vmem:[%s0 + $0x2f8] sm:$0xff]
    %v113 = vld [vmem:[%s0 + $0x300] sm:$0xff]
    %v114 = vld [vmem:[%s0 + $0x308] sm:$0xff]
    %v115 = vld [vmem:[%s0 + $0x310] sm:$0xff]
    %v116 = vld [vmem:[%s0 + $0x318] sm:$0xff]
    %v117 = vld [vmem:[%s0 + $0x320] sm:$0xff]
    %v118 = vld [vmem:[%s0 + $0x328] sm:$0xff]
    %v119 = vld [vmem:[%s0 + $0x330] sm:$0xff]
    %v120 = vld [vmem:[%s0 + $0x338] sm:$0xff]
    %v121 = vld [vmem:[%s0 + $0x340] sm:$0xff]
    %v122 = vld [vmem:[%s0 + $0x348] sm:$0xff]
    %v123 = vld [vmem:[%s0 + $0x350] sm:$0xff]
    %v124 = vld [vmem:[%s0 + $0x358] sm:$0xff]
    %v125 = vld [vmem:[%s0 + $0x360] sm:$0xff]
    %v126 = vld [vmem:[%s0 + $0x368] sm:$0xff]
    %v127 = vld [vmem:[%s0 + $0x370] sm:$0xff]
    %v128 = vld [vmem:[%s0 + $0x378] sm:$0xff]
    %v129 = vld [vmem:[%s0 + $0x380] sm:$0xff]
    %v130 = vld [vmem:[%s0 + $0x388] sm:$0xff]
    %v131 = vld [vmem:[%s0 + $0x390] sm:$0xff]
    %v132 = vld [vmem:[%s0 + $0x398] sm:$0xff]
    %v133 = vld [vmem:[%s0 + $0x3a0] sm:$0xff]
    %v134 = vld [vmem:[%s0 + $0x3a8] sm:$0xff]
    %v135 = vld [vmem:[%s0 + $0x3b0] sm:$0xff]
    %v136 = vld [vmem:[%s0 + $0x3b8] sm:$0xff]
    %v137 = vld [vmem:[%s0 + $0x3c0] sm:$0xff]
    %v138 = vld [vmem:[%s0 + $0x3c8] sm:$0xff]
    %v139 = vld [vmem:[%s0 + $0x3d0] sm:$0xff]
    %v140 = vld [vmem:[%s0 + $0x3d8] sm:$0xff]
    %v141 = vld [vmem:[%s0 + $0x3e0] sm:$0xff]
    %v142 = vld [vmem:[%s0 + $0x3e8] sm:$0xff]
    %v143 = vld [vmem:[%s0 + $0x3f0] sm:$0xff]
    %v144 = vld [vmem:[%s0 + $0x3f8] sm:$0xff]
    %v145 = vld [vmem:[%s0 + $0x400] sm:$0xff]
    %v146 = vld [vmem:[%s0 + $0x408] sm:$0xff]
    %v147 = vld [vmem:[%s0 + $0x410] sm:$0xff]
    %v148 = vld [vmem:[%s0 + $0x418] sm:$0xff]
    %v149 = vld [vmem:[%s0 + $0x420] sm:$0xff]
    %v150 = vld [vmem:[%s0 + $0x428] sm:$0xff]
    %v151 = vld [vmem:[%s0 + $0x430] sm:$0xff]
    %v152 = vld [vmem:[%s0 + $0x438] sm:$0xff]
    %v153 = vld [vmem:[%s0 + $0x440] sm:$0xff]
    %v154 = vld [vmem:[%s0 + $0x448] sm:$0xff]
    %v155 = vld [vmem:[%s0 + $0x450] sm:$0xff]
    %v156 = vld [vmem:[%s0 + $0x458] sm:$0xff]
    %v157 = vld [vmem:[%s0 + $0x460] sm:$0xff]
    %v158 = vld [vmem:[%s0 + $0x468] sm:$0xff]
    %v159 = vld [vmem:[%s0 + $0x470] sm:$0xff]
    %v160 = vld [vmem:[%s0 + $0x478] sm:$0xff]
    %v161 = vld [vmem:[%s0 + $0x480] sm:$0xff]
    %v162 = vld [vmem:[%s0 + $0x488] sm:$0xff]
    %v163 = vld [vmem:[%s0 + $0x490] sm:$0xff]
    %v164 = vld [vmem:[%s0 + $0x498] sm:$0xff]
    %v165 = vld [vmem:[%s0 + $0x4a0] sm:$0xff]
    %v166 = vld [vmem:[%s0 + $0x4a8] sm:$0xff]
    %v167 = vld [vmem:[%s0 + $0x4b0] sm:$0xff]
    %v168 = vld [vmem:[%s0 + $0x4b8] sm:$0xff]
    %v169 = vld [vmem:[%s0 + $0x4c0] sm:$0xff]
    %v170 = vld [vmem:[%s0 + $0x4c8] sm:$0xff]
    %v171 = vld [vmem:[%s0 + $0x4d0] sm:$0xff]
    %v172 = vld [vmem:[%s0 + $0x4d8] sm:$0xff]
    %v173 = vld [vmem:[%s0 + $0x4e0] sm:$0xff]
    %v174 = vld [vmem:[%s0 + $0x4e8] sm:$0xff]
    %v175 = vld [vmem:[%s0 + $0x4f0] sm:$0xff]
    %v176 = vld [vmem:[%s0 + $0x4f8] sm:$0xff]
    %v177 = vld [vmem:[%s0 + $0x500] sm:$0xff]
    %v178 = vld [vmem:[%s0 + $0x508] sm:$0xff]
    %v179 = vld [vmem:[%s0 + $0x510] sm:$0xff]
    %v180 = vld [vmem:[%s0 + $0x518] sm:$0xff]
    %v181 = vld [vmem:[%s0 + $0x520] sm:$0xff]
    %v182 = vld [vmem:[%s0 + $0x528] sm:$0xff]
    %v183 = vld [vmem:[%s0 + $0x530] sm:$0xff]
    %v184 = vld [vmem:[%s0 + $0x538] sm:$0xff]
    %v185 = vld [vmem:[%s0 + $0x540] sm:$0xff]
    %v186 = vld [vmem:[%s0 + $0x548] sm:$0xff]
    %v187 = vld [vmem:[%s0 + $0x550] sm:$0xff]
    %v188 = vld [vmem:[%s0 + $0x558] sm:$0xff]
    %v189 = vld [vmem:[%s0 + $0x560] sm:$0xff]
    %v190 = vld [vmem:[%s0 + $0x568] sm:$0xff]
    %v191 = vld [vmem:[%s0 + $0x570] sm:$0xff]
    %v192 = vld [vmem:[%s0 + $0x578] sm:$0xff]
    %v193 = vld [vmem:[%s0 + $0x580] sm:$0xff]
    %v194 = vld [vmem:[%s0 + $0x588] sm:$0xff]
    %v195 = vld [vmem:[%s0 + $0x590] sm:$0xff]
    %v196 = vld [vmem:[%s0 + $0x598] sm:$0xff]
    %v197 = vld [vmem:[%s0 + $0x5a0] sm:$0xff]
    %v198 = vld [vmem:[%s0 + $0x5a8] sm:$0xff]
    %v199 = vld [vmem:[%s0 + $0x5b0] sm:$0xff]
    %v200 = vld [vmem:[%s0 + $0x5b8] sm:$0xff]
    %v201 = vld [vmem:[%s0 + $0x5c0] sm:$0xff]
    %v202 = vld [vmem:[%s0 + $0x5c8] sm:$0xff]
    %v203 = vld [vmem:[%s0 + $0x5d0] sm:$0xff]
    %v204 = vld [vmem:[%s0 + $0x5d8] sm:$0xff]
    %v205 = vld [vmem:[%s0 + $0x5e0] sm:$0xff]
    %v206 = vld [vmem:[%s0 + $0x5e8] sm:$0xff]
    %v207 = vld [vmem:[%s0 + $0x5f0] sm:$0xff]
    %v208 = vld [vmem:[%s0 + $0x5f8] sm:$0xff]
    %v209 = vld [vmem:[%s0 + $0x600] sm:$0xff]
    %v210 = vld [vmem:[%s0 + $0x608] sm:$0xff]
    %v211 = vld [vmem:[%s0 + $0x610] sm:$0xff]
    %v212 = vld [vmem:[%s0 + $0x618] sm:$0xff]
    %v213 = vld [vmem:[%s0 + $0x620] sm:$0xff]
    %v214 = vld [vmem:[%s0 + $0x628] sm:$0xff]
    %v215 = vld [vmem:[%s0 + $0x630] sm:$0xff]
    %v216 = vld [vmem:[%s0 + $0x638] sm:$0xff]
    %v217 = vld [vmem:[%s0 + $0x640] sm:$0xff]
    %v218 = vld [vmem:[%s0 + $0x648] sm:$0xff]
    %v219 = vld [vmem:[%s0 + $0x650] sm:$0xff]
    %v220 = vld [vmem:[%s0 + $0x658] sm:$0xff]
    %v221 = vld [vmem:[%s0 + $0x660] sm:$0xff]
    %v222 = vld [vmem:[%s0 + $0x668] sm:$0xff]
    %v223 = vld [vmem:[%s0 + $0x670] sm:$0xff]
    %v224 = vld [vmem:[%s0 + $0x678] sm:$0xff]
    %v225 = vld [vmem:[%s0 + $0x680] sm:$0xff]
    %v226 = vld [vmem:[%s0 + $0x688] sm:$0xff]
    %v227 = vld [vmem:[%s0 + $0x690] sm:$0xff]
    %v228 = vld [vmem:[%s0 + $0x698] sm:$0xff]
    %v229 = vld [vmem:[%s0 + $0x6a0] sm:$0xff]
    %v230 = vld [vmem:[%s0 + $0x6a8] sm:$0xff]
    %v231 = vld [vmem:[%s0 + $0x6b0] sm:$0xff]
    %v232 = vld [vmem:[%s0 + $0x6b8] sm:$0xff]
    %v233 = vld [vmem:[%s0 + $0x6c0] sm:$0xff]
    %v234 = vld [vmem:[%s0 + $0x6c8] sm:$0xff]
    %v235 = vld [vmem:[%s0 + $0x6d0] sm:$0xff]
    %v236 = vld [vmem:[%s0 + $0x6d8] sm:$0xff]
    %v237 = vld [vmem:[%s0 + $0x6e0] sm:$0xff]
    %v238 = vld [vmem:[%s0 + $0x6e8] sm:$0xff]
    %v239 = vld [vmem:[%s0 + $0x6f0] sm:$0xff]
    %v240 = vld [vmem:[%s0 + $0x6f8] sm:$0xff]
    %v241 = vld [vmem:[%s0 + $0x700] sm:$0xff]
    %v242 = vld [vmem:[%s0 + $0x708] sm:$0xff]
    %v243 = vld [vmem:[%s0 + $0x710] sm:$0xff]
    %v244 = vld [vmem:[%s0 + $0x718] sm:$0xff]
    %v245 = vld [vmem:[%s0 + $0x720] sm:$0xff]
    %v246 = vld [vmem:[%s0 + $0x728] sm:$0xff]
    %v247 = vld [vmem:[%s0 + $0x730] sm:$0xff]
    %v248 = vld [vmem:[%s0 + $0x738] sm:$0xff]
    %v249 = vld [vmem:[%s0 + $0x740] sm:$0xff]
    %v250 = vld [vmem:[%s0 + $0x748] sm:$0xff]
    %v251 = vld [vmem:[%s0 + $0x750] sm:$0xff]
    %v252 = vld [vmem:[%s0 + $0x758] sm:$0xff]
    %v253 = vld [vmem:[%s0 + $0x760] sm:$0xff]
    %v254 = vld [vmem:[%s0 + $0x768] sm:$0xff]
    %v255 = vld [vmem:[%s0 + $0x770] sm:$0xff]
    %v256 = vld [vmem:[%s0 + $0x778] sm:$0xff]
    %v257 = vld [vmem:[%s0 + $0x780] sm:$0xff]
    %v258 = vld [vmem:[%s0 + $0x788] sm:$0xff]
    %v259 = vld [vmem:[%s0 + $0x790] sm:$0xff]
    %v260 = vld [vmem:[%s0 + $0x798] sm:$0xff]
    %v261 = vld [vmem:[%s0 + $0x7a0] sm:$0xff]
    %v262 = vld [vmem:[%s0 + $0x7a8] sm:$0xff]
    %v263 = vld [vmem:[%s0 + $0x7b0] sm:$0xff]
    %v264 = vld [vmem:[%s0 + $0x7b8] sm:$0xff]
    %v265 = vld [vmem:[%s0 + $0x7c0] sm:$0xff]
    %v266 = vld [vmem:[%s0 + $0x7c8] sm:$0xff]
    %v267 = vadd.f32 %v17, %v19
    %v268 = vadd.f32 %v267, %v21
    %v269 = vadd.f32 %v268, %v23
    %v270 = vadd.f32 %v269, %v25
    %v271 = vadd.f32 %v270, %v27
    %v272 = vadd.f32 %v271, %v29
    %v273 = vadd.f32 %v272, %v31
    %v274 = vadd.f32 %v273, %v33
    %v275 = vadd.f32 %v274, %v35
    %v276 = vadd.f32 %v275, %v37
    %v277 = vadd.f32 %v276, %v39
    %v278 = vadd.f32 %v277, %v41
    %v279 = vadd.f32 %v278, %v43
    %v280 = vadd.f32 %v279, %v45
    %v281 = vadd.f32 %v280, %v47
    %v282 = vadd.f32 %v281, %v49
    %v283 = vadd.f32 %v282, %v51
    %v284 = vadd.f32 %v283, %v53
    %v285 = vadd.f32 %v284, %v55
    %v286 = vadd.f32 %v285, %v57
    %v287 = vadd.f32 %v286, %v59
    %v288 = vadd.f32 %v287, %v61
    %v289 = vadd.f32 %v288, %v63
    %v290 = vadd.f32 %v289, %v65
    %v291 = vadd.f32 %v290, %v67
    %v292 = vadd.f32 %v291, %v69
    %v293 = vadd.f32 %v292, %v71
    %v294 = vadd.f32 %v293, %v73
    %v295 = vadd.f32 %v294, %v75
    %v296 = vadd.f32 %v295, %v77
    %v297 = vadd.f32 %v296, %v79
    %v298 = vadd.f32 %v297, %v81
    %v299 = vadd.f32 %v298, %v83
    %v300 = vadd.f32 %v299, %v85
    %v301 = vadd.f32 %v300, %v87
    %v302 = vadd.f32 %v301, %v89
    %v303 = vadd.f32 %v302, %v91
    %v304 = vadd.f32 %v303, %v93
    %v305 = vadd.f32 %v304, %v95
    %v306 = vadd.f32 %v305, %v97
    %v307 = vadd.f32 %v306, %v99
    %v308 = vadd.f32 %v307, %v101
    %v309 = vadd.f32 %v308, %v103
    %v310 = vadd.f32 %v309, %v105
    %v311 = vadd.f32 %v310, %v107
    %v312 = vadd.f32 %v311, %v109
    %v313 = vadd.f32 %v312, %v111
    %v314 = vadd.f32 %v313, %v113
    %v315 = vadd.f32 %v314, %v115
    %v316 = vadd.f32 %v315, %v117
    %v317 = vadd.f32 %v316, %v119
    %v318 = vadd.f32 %v317, %v121
    %v319 = vadd.f32 %v318, %v123
    %v320 = vadd.f32 %v319, %v125
    %v321 = vadd.f32 %v320, %v127
    %v322 = vadd.f32 %v321, %v129
    %v323 = vadd.f32 %v322, %v131
    %v324 = vadd.f32 %v323, %v133
    %v325 = vadd.f32 %v324, %v135
    %v326 = vadd.f32 %v325, %v137
    %v327 = vadd.f32 %v326, %v139
    %v328 = vadd.f32 %v327, %v141
    %v329 = vadd.f32 %v328, %v143
    %v330 = vadd.f32 %v329, %v145
    %v331 = vadd.f32 %v330, %v147
    %v332 = vadd.f32 %v331, %v149
    %v333 = vadd.f32 %v332, %v151
    %v334 = vadd.f32 %v333, %v153
    %v335 = vadd.f32 %v334, %v155
    %v336 = vadd.f32 %v335, %v157
    %v337 = vadd.f32 %v336, %v159
    %v338 = vadd.f32 %v337, %v161
    %v339 = vadd.f32 %v338, %v163
    %v340 = vadd.f32 %v339, %v165
    %v341 = vadd.f32 %v340, %v167
    %v342 = vadd.f32 %v341, %v169
    %v343 = vadd.f32 %v342, %v171
    %v344 = vadd.f32 %v343, %v173
    %v345 = vadd.f32 %v344, %v175
    %v346 = vadd.f32 %v345, %v177
    %v347 = vadd.f32 %v346, %v179
    %v348 = vadd.f32 %v347, %v181
    %v349 = vadd.f32 %v348, %v183
    %v350 = vadd.f32 %v349, %v185
    %v351 = vadd.f32 %v350, %v187
    %v352 = vadd.f32 %v351, %v189
    %v353 = vadd.f32 %v352, %v191
    %v354 = vadd.f32 %v353, %v193
    %v355 = vadd.f32 %v354, %v195
    %v356 = vadd.f32 %v355, %v197
    %v357 = vadd.f32 %v356, %v199
    %v358 = vadd.f32 %v357, %v201
    %v359 = vadd.f32 %v358, %v203
    %v360 = vadd.f32 %v359, %v205
    %v361 = vadd.f32 %v360, %v207
    %v362 = vadd.f32 %v361, %v209
    %v363 = vadd.f32 %v362, %v211
    %v364 = vadd.f32 %v363, %v213
    %v365 = vadd.f32 %v364, %v215
    %v366 = vadd.f32 %v365, %v217
    %v367 = vadd.f32 %v366, %v219
    %v368 = vadd.f32 %v367, %v221
    %v369 = vadd.f32 %v368, %v223
    %v370 = vadd.f32 %v369, %v225
    %v371 = vadd.f32 %v370, %v227
    %v372 = vadd.f32 %v371, %v229
    %v373 = vadd.f32 %v372, %v231
    %v374 = vadd.f32 %v373, %v233
    %v375 = vadd.f32 %v374, %v235
    %v376 = vadd.f32 %v375, %v237
    %v377 = vadd.f32 %v376, %v239
    %v378 = vadd.f32 %v377, %v241
    %v379 = vadd.f32 %v378, %v243
    %v380 = vadd.f32 %v379, %v245
    %v381 = vadd.f32 %v380, %v247
    %v382 = vadd.f32 %v381, %v249
    %v383 = vadd.f32 %v382, %v251
    %v384 = vadd.f32 %v383, %v253
    %v385 = vadd.f32 %v384, %v255
    %v386 = vadd.f32 %v385, %v257
    %v387 = vadd.f32 %v386, %v259
    %v388 = vadd.f32 %v387, %v261
    %v389 = vadd.f32 %v388, %v263
    %v390 = vadd.f32 %v389, %v265
    %v391 = vadd.f32 %v18, %v20
    %v392 = vadd.f32 %v391, %v22
    %v393 = vadd.f32 %v392, %v24
    %v394 = vadd.f32 %v393, %v26
    %v395 = vadd.f32 %v394, %v28
    %v396 = vadd.f32 %v395, %v30
    %v397 = vadd.f32 %v396, %v32
    %v398 = vadd.f32 %v397, %v34
    %v399 = vadd.f32 %v398, %v36
    %v400 = vadd.f32 %v399, %v38
    %v401 = vadd.f32 %v400, %v40
    %v402 = vadd.f32 %v401, %v42
    %v403 = vadd.f32 %v402, %v44
    %v404 = vadd.f32 %v403, %v46
    %v405 = vadd.f32 %v404, %v48
    %v406 = vadd.f32 %v405, %v50
    %v407 = vadd.f32 %v406, %v52
    %v408 = vadd.f32 %v407, %v54
    %v409 = vadd.f32 %v408, %v56
    %v410 = vadd.f32 %v409, %v58
    %v411 = vadd.f32 %v410, %v60
    %v412 = vadd.f32 %v411, %v62
    %v413 = vadd.f32 %v412, %v64
    %v414 = vadd.f32 %v413, %v66
    %v415 = vadd.f32 %v414, %v68
    %v416 = vadd.f32 %v415, %v70
    %v417 = vadd.f32 %v416, %v72
    %v418 = vadd.f32 %v417, %v74
    %v419 = vadd.f32 %v418, %v76
    %v420 = vadd.f32 %v419, %v78
    %v421 = vadd.f32 %v420, %v80
    %v422 = vadd.f32 %v421, %v82
    %v423 = vadd.f32 %v422, %v84
    %v424 = vadd.f32 %v423, %v86
    %v425 = vadd.f32 %v424, %v88
    %v426 = vadd.f32 %v425, %v90
    %v427 = vadd.f32 %v426, %v92
    %v428 = vadd.f32 %v427, %v94
    %v429 = vadd.f32 %v428, %v96
    %v430 = vadd.f32 %v429, %v98
    %v431 = vadd.f32 %v430, %v100
    %v432 = vadd.f32 %v431, %v102
    %v433 = vadd.f32 %v432, %v104
    %v434 = vadd.f32 %v433, %v106
    %v435 = vadd.f32 %v434, %v108
    %v436 = vadd.f32 %v435, %v110
    %v437 = vadd.f32 %v436, %v112
    %v438 = vadd.f32 %v437, %v114
    %v439 = vadd.f32 %v438, %v116
    %v440 = vadd.f32 %v439, %v118
    %v441 = vadd.f32 %v440, %v120
    %v442 = vadd.f32 %v441, %v122
    %v443 = vadd.f32 %v442, %v124
    %v444 = vadd.f32 %v443, %v126
    %v445 = vadd.f32 %v444, %v128
    %v446 = vadd.f32 %v445, %v130
    %v447 = vadd.f32 %v446, %v132
    %v448 = vadd.f32 %v447, %v134
    %v449 = vadd.f32 %v448, %v136
    %v450 = vadd.f32 %v449, %v138
    %v451 = vadd.f32 %v450, %v140
    %v452 = vadd.f32 %v451, %v142
    %v453 = vadd.f32 %v452, %v144
    %v454 = vadd.f32 %v453, %v146
    %v455 = vadd.f32 %v454, %v148
    %v456 = vadd.f32 %v455, %v150
    %v457 = vadd.f32 %v456, %v152
    %v458 = vadd.f32 %v457, %v154
    %v459 = vadd.f32 %v458, %v156
    %v460 = vadd.f32 %v459, %v158
    %v461 = vadd.f32 %v460, %v160
    %v462 = vadd.f32 %v461, %v162
    %v463 = vadd.f32 %v462, %v164
    %v464 = vadd.f32 %v463, %v166
    %v465 = vadd.f32 %v464, %v168
    %v466 = vadd.f32 %v465, %v170
    %v467 = vadd.f32 %v466, %v172
    %v468 = vadd.f32 %v467, %v174
    %v469 = vadd.f32 %v468, %v176
    %v470 = vadd.f32 %v469, %v178
    %v471 = vadd.f32 %v470, %v180
    %v472 = vadd.f32 %v471, %v182
    %v473 = vadd.f32 %v472, %v184
    %v474 = vadd.f32 %v473, %v186
    %v475 = vadd.f32 %v474, %v188
    %v476 = vadd.f32 %v475, %v190
    %v477 = vadd.f32 %v476, %v192
    %v478 = vadd.f32 %v477, %v194
    %v479 = vadd.f32 %v478, %v196
    %v480 = vadd.f32 %v479, %v198
    %v481 = vadd.f32 %v480, %v200
    %v482 = vadd.f32 %v481, %v202
    %v483 = vadd.f32 %v482, %v204
    %v484 = vadd.f32 %v483, %v206
    %v485 = vadd.f32 %v484, %v208
    %v486 = vadd.f32 %v485, %v210
    %v487 = vadd.f32 %v486, %v212
    %v488 = vadd.f32 %v487, %v214
    %v489 = vadd.f32 %v488, %v216
    %v490 = vadd.f32 %v489, %v218
    %v491 = vadd.f32 %v490, %v220
    %v492 = vadd.f32 %v491, %v222
    %v493 = vadd.f32 %v492, %v224
    %v494 = vadd.f32 %v493, %v226
    %v495 = vadd.f32 %v494, %v228
    %v496 = vadd.f32 %v495, %v230
    %v497 = vadd.f32 %v496, %v232
    %v498 = vadd.f32 %v497, %v234
    %v499 = vadd.f32 %v498, %v236
    %v500 = vadd.f32 %v499, %v238
    %v501 = vadd.f32 %v500, %v240
    %v502 = vadd.f32 %v501, %v242
    %v503 = vadd.f32 %v502, %v244
    %v504 = vadd.f32 %v503, %v246
    %v505 = vadd.f32 %v504, %v248
    %v506 = vadd.f32 %v505, %v250
    %v507 = vadd.f32 %v506, %v252
    %v508 = vadd.f32 %v507, %v254
    %v509 = vadd.f32 %v508, %v256
    %v510 = vadd.f32 %v509, %v258
    %v511 = vadd.f32 %v510, %v260
    %v512 = vadd.f32 %v511, %v262
    %v513 = vadd.f32 %v512, %v264
    %v514 = vadd.f32 %v513, %v266
    %v515 = vadd.f32 %v15, %v390
    %v516 = vadd.f32 %v16, %v514
    %517 = vst [vmem:[#allocation2] sm:$0xff] %v515
    %518 = vst [vmem:[#allocation2 + $0x8] sm:$0xff] %v516
    // Predicated region
    $region10: #{tpu_custom_call.1} parent=1 // pred_check
      %p519 = pneg %p9
    $region11: #{tpu_custom_call.1} parent=1 // pred_check_branch
      %521 = sbr.rel (%p519) target = $region13
    $region12: #{tpu_custom_call.1} parent=1 // pred_region
      %v522 = vld [vmem:[#allocation2] sm:$0xff]
      %v523 = vld [vmem:[#allocation2 + $0x8] sm:$0xff]
      %v524 = vrot.slane %v522, 4
      %v525 = vadd.f32 %v522, %v524
      %v526 = vrot.slane %v525, 2
      %v527 = vadd.f32 %v525, %v526
      %v528 = vrot.slane %v527, 1
      %v529 = vadd.f32 %v527, %v528
      %v530 = vrot.slane %v523, 4
      %v531 = vadd.f32 %v523, %v530
      %v532 = vrot.slane %v531, 2
      %v533 = vadd.f32 %v531, %v532
      %v534 = vrot.slane %v533, 1
      %v535 = vadd.f32 %v533, %v534
      %v536 = vmul.f32 %v529, 0.001
      %v537 = vmul.f32 %v535, 0.001
      %v540 = vcombine.low %v536, %v537
      %v542 = vunpack.c.l.s4 1966171168
      %v543 = vunpack.c.0.s8 %v542
      %v544 = vlaneseq
      %v545 = vshrl.u32 %v544, 7
      %v546 = vsub.s32 %v543, %v545
      %v547 = vrot.slane %v540, %v546
      %v549 = vunpack.c.l.s4 1966171168
      %v550 = vunpack.c.0.s8 %v549
      %v551 = vlaneseq
      %v552 = vshrl.u32 %v551, 7
      %v553 = vsub.s32 %v550, %v552
      %v554 = vrot.slane %v547, %v553
      %v556 = vlaneseq
      %vm557 = vcmp.ge.s32.totalorder %v556, 0
      %vm558 = vcmp.lt.s32.totalorder %v556, 256
      %vm559 = vmand %vm557, %vm558
      %560 = vst.msk [vmem:[#allocation3] sm:$0x3] %vm559, %v554
    $region13: #{tpu_custom_call.1} parent=1 // pred_fallthru
      _
    // Predicated region
    $region14: #{tpu_custom_call.1} parent=1 // pred_check
      _
    $region15: #{tpu_custom_call.1} parent=1 // pred_check_branch
      %562 = sbr.rel (0) target = $region17
    $region16: #{tpu_custom_call.1} parent=1 // pred_region
      %s564 = ssub.s32 32, 32
      %565 = vsyncadd [#allocation4], %s564
      %s567 = sshll.u32 [#allocation3], 4
      %s568 = int_to_ptr.vmem [resolvable:$true] %s567
      %570 = dma.vmem_to_hbm [thread:$0]  %s568, 32, %s1, [#allocation4]
    $region17: #{tpu_custom_call.1} parent=1 // pred_fallthru
      _
    // Predicated region
    $region18: #{tpu_custom_call.1} parent=1 // pred_check
      _
    $region19: #{tpu_custom_call.1} parent=1 // pred_check_branch
      %572 = sbr.rel (0) target = $region21
    $region20: #{tpu_custom_call.1} parent=1 // pred_region
      %573 = dma.done [#allocation4], 32
    $region21: #{tpu_custom_call.1} parent=1 // pred_fallthru
      _
    %574 = vsyncpa [#allocation4], 1

</llo_original>
